<compile_context>
chip_gen: v5e
topology: v5e:2x2
jax: 0.10.0
libtpu: 0.0.40
codegen_flags: <defaults>
</compile_context>

<pallas_src>
import functools

import jax
import jax.numpy as jnp
from jax.experimental import pallas as pl
from jax.experimental.pallas import tpu as pltpu


def _shifted_softplus_math(x, shift, beta, threshold, out_dtype):
    z = x.astype(jnp.float32) + shift
    bz = beta * z
    # Clamp before exp so the softplus branch never overflows; linear
    # passthrough above the threshold matches torch.nn.Softplus exactly.
    sp = (1.0 / beta) * jnp.log1p(jnp.exp(jnp.minimum(bz, threshold)))
    return jnp.where(bz > threshold, z, sp).astype(out_dtype)


def _shifted_softplus_kernel(x_ref, o_ref, *, shift, beta, threshold):
    o_ref[...] = _shifted_softplus_math(
        x_ref[...], shift, beta, threshold, o_ref.dtype
    )


def shifted_softplus(x, shift=-5.0, beta=1.0, threshold=20.0):
    """Applies ShiftedSoftplus elementwise, preserving shape and dtype."""
    orig_shape = x.shape
    orig_dtype = x.dtype
    n = x.size
    if n == 0:
        return x
    x_flat = jnp.ravel(x)

    # ---- choose a wide lane-dense slab width (multiple of 128) ----
    lanes = None
    for cand in (4096, 2048, 1024, 512, 256, 128):
        if n >= cand and n % cand == 0:
            lanes = cand
            break
    if lanes is None:
        lanes = 1024 if n >= 1024 else 128

    n_bulk = (n // lanes) * lanes
    if n_bulk == 0:
        # Too small for a single vreg-aligned tile: plain jnp (XLA fuses it).
        return _shifted_softplus_math(
            x_flat, shift, beta, threshold, orig_dtype
        ).reshape(orig_shape)

    rows = n_bulk // lanes
    x2d = (x_flat if n_bulk == n else x_flat[:n_bulk]).reshape(rows, lanes)

    # ---- block-size selection ----
    itemsize = int(jnp.dtype(orig_dtype).itemsize)
    # min sublane tile: 8 rows (f32), 16 (bf16), 32 (int8/fp8)
    min_rows = max(8, 32 // max(itemsize, 1))
    # ~2 MiB per tile buffer -> 4 buffers (double-buffered in + out) ~= 8 MiB VMEM.
    block_rows = max(min_rows, (2 * 1024 * 1024) // (lanes * itemsize))
    bulk_bytes = n_bulk * itemsize
    if rows > min_rows and bulk_bytes > (1 << 20):
        # Keep at least 2 grid steps only when each step still gets a big
        # tile (v7x 2-TC sharding + pipeline overlap); tiny inputs stay at 1
        # step to avoid paying per-step overhead.
        block_rows = min(block_rows, max(min_rows, pl.cdiv(rows, 2)))
    block_rows = min(block_rows, rows)
    if block_rows != rows:
        # keep the sublane dim tileable: multiple of min_rows (or == rows)
        block_rows = max(min_rows, (block_rows // min_rows) * min_rows)

    grid = (pl.cdiv(rows, block_rows),)  # ragged last block handled by Pallas

    kernel = functools.partial(
        _shifted_softplus_kernel, shift=shift, beta=beta, threshold=threshold
    )

    y2d = pl.pallas_call(
        kernel,
        out_shape=jax.ShapeDtypeStruct((rows, lanes), orig_dtype),
        grid_spec=pltpu.PrefetchScalarGridSpec(
            num_scalar_prefetch=0,
            grid=grid,
            in_specs=[pl.BlockSpec((block_rows, lanes), lambda i: (i, 0))],
            out_specs=pl.BlockSpec((block_rows, lanes), lambda i: (i, 0)),
        ),
        compiler_params=pltpu.CompilerParams(
            dimension_semantics=("parallel",),
        ),
    )(x2d)

    y_bulk = y2d.reshape(n_bulk)
    if n_bulk == n:
        return y_bulk.reshape(orig_shape)
    # tiny unaligned tail (< lanes elements): plain jnp, XLA fuses it
    y_tail = _shifted_softplus_math(
        x_flat[n_bulk:], shift, beta, threshold, orig_dtype
    )
    return jnp.concatenate([y_bulk, y_tail]).reshape(orig_shape)


if __name__ == "__main__":
    shift, beta, threshold = -5.0, 1.0, 20.0

    def ref_fn(v):
        z = v.astype(jnp.float32) + shift
        bz = beta * z
        sp = (1.0 / beta) * jnp.log1p(jnp.exp(jnp.minimum(bz, threshold)))
        return jnp.where(bz > threshold, z, sp).astype(v.dtype)

    key = jax.random.PRNGKey(0)
    k0, k1, k2 = jax.random.split(key, 3)

    # main example: small NCHW activation tensor (NeRF MLP-style usage)
    x = jax.random.normal(k0, (2, 4, 16, 16), dtype=jnp.float32) * 10.0
    y = shifted_softplus(x, shift, beta, threshold)
    jax.block_until_ready(y)
    assert y.shape == x.shape and y.dtype == x.dtype
    assert jnp.max(jnp.abs(y - ref_fn(x))) < 1e-5

    # unaligned size -> exercises kernel-on-bulk + jnp-tail path (no padding copies)
    x_odd = jax.random.normal(k1, (7, 300), dtype=jnp.float32) * 10.0
    y_odd = shifted_softplus(x_odd, shift, beta, threshold)
    jax.block_until_ready(y_odd)
    assert y_odd.shape == x_odd.shape and y_odd.dtype == x_odd.dtype
    assert jnp.max(jnp.abs(y_odd - ref_fn(x_odd))) < 1e-5

    # larger aligned size -> multi-step grid / big-tile path
    x_big = jax.random.normal(k2, (64, 4096), dtype=jnp.float32) * 10.0
    y_big = shifted_softplus(x_big, shift, beta, threshold)
    jax.block_until_ready(y_big)
    assert jnp.max(jnp.abs(y_big - ref_fn(x_big))) < 1e-5

    # tiny input -> pure-jnp fallback path
    x_tiny = jax.random.normal(k0, (3, 5), dtype=jnp.float32) * 10.0
    y_tiny = shifted_softplus(x_tiny, shift, beta, threshold)
    jax.block_until_ready(y_tiny)
    assert jnp.max(jnp.abs(y_tiny - ref_fn(x_tiny))) < 1e-5

    print("KERNEL_OK")
</pallas_src>

<mosaic_0001>
module attributes {stable_mosaic.version = 11 : i64} {
  func.func @_shifted_softplus_kernel(%arg0: i32, %arg1: memref<1x2048xf32, #tpu.memory_space<vmem>>, %arg2: memref<1x2048xf32, #tpu.memory_space<vmem>>) attributes {dimension_semantics = [#tpu.dimension_semantics<parallel>], iteration_bounds = array<i64: 1>, scalar_prefetch = 0 : i64, scratch_operands = 0 : i64, tpu.core_type = #tpu.core_type<tc>, window_params = [{transform_indices = @transform_0, window_bounds = array<i64: 1, 2048>}, {transform_indices = @transform_1, window_bounds = array<i64: 1, 2048>}]} {
    %c0 = arith.constant 0 : index
    %c0_0 = arith.constant 0 : index
    %0 = vector.load %arg1[%c0, %c0_0] : memref<1x2048xf32, #tpu.memory_space<vmem>>, vector<1x2048xf32>
    %cst = arith.constant -5.000000e+00 : f32
    %1 = vector.broadcast %cst : f32 to vector<1x2048xf32>
    %2 = arith.addf %0, %1 : vector<1x2048xf32>
    %cst_1 = arith.constant 1.000000e+00 : f32
    %3 = vector.broadcast %cst_1 : f32 to vector<1x2048xf32>
    %4 = arith.mulf %3, %2 : vector<1x2048xf32>
    %cst_2 = arith.constant 2.000000e+01 : f32
    %5 = vector.broadcast %cst_2 : f32 to vector<1x2048xf32>
    %6 = arith.minimumf %4, %5 : vector<1x2048xf32>
    %7 = math.exp %6 : vector<1x2048xf32>
    %8 = math.log1p %7 : vector<1x2048xf32>
    %cst_3 = arith.constant 1.000000e+00 : f32
    %9 = vector.broadcast %cst_3 : f32 to vector<1x2048xf32>
    %10 = arith.mulf %9, %8 : vector<1x2048xf32>
    %cst_4 = arith.constant 2.000000e+01 : f32
    %11 = vector.broadcast %cst_4 : f32 to vector<1x2048xf32>
    %12 = arith.cmpf ogt, %4, %11 : vector<1x2048xf32>
    %13 = arith.select %12, %2, %10 : vector<1x2048xi1>, vector<1x2048xf32>
    %c0_5 = arith.constant 0 : index
    %c0_6 = arith.constant 0 : index
    %14 = vector.load %arg2[%c0_5, %c0_6] : memref<1x2048xf32, #tpu.memory_space<vmem>>, vector<1x2048xf32>
    tpu.vector_store %arg2[%c0_5, %c0_6], %13 {strides = array<i32>} : memref<1x2048xf32, #tpu.memory_space<vmem>>, vector<1x2048xf32>,
    return
  }
  func.func @transform_0(%arg0: i32) -> (i32, i32) {
    %c0_i32 = arith.constant 0 : i32
    %c0_i32_0 = arith.constant 0 : i32
    return %arg0, %c0_i32 : i32, i32
  }
  func.func @transform_1(%arg0: i32) -> (i32, i32) {
    %c0_i32 = arith.constant 0 : i32
    %c0_i32_0 = arith.constant 0 : i32
    return %arg0, %c0_i32 : i32, i32
  }
}

</mosaic_0001>

<llo_original>
// kernel: tpu_custom_call.1
$region0: #{tpu_custom_call.1}
  #allocation0 [shape = 'u32[]', space=smem, size = 0x4, offset = 0x4, fixed_abs, tag = 'smem constant byte address 0x4 - core index']
  #allocation1 [shape = 'u32[72,128]{1,0:T(1,128)}', space=vmem, size = 0x9000, scoped, tag = 'internal scratch']
  %s0 = inlined_call_operand.hbm [shape: f32[1,2048], index: 0, kind: input, shape index: {}]
  %s1 = inlined_call_operand.hbm [shape: f32[1,2048], index: 1, kind: output, shape index: {}]
  %s2 = sld [smem:[#allocation0]]
  $region18: #{tpu_custom_call.1} parent=0
    _
  %s4 = ssub.s32 1, %s2
  %s5 = scalar_select 0, %s4, %s2
  $region1: #{tpu_custom_call.1} parent=0
    #allocation2 [shape = 'u8[8192]{0}', space=vmem, size = 0x2000, scoped, tag = 'input window, operand 0, single buffered']
    #allocation3 [shape = 's32[1]{0}', space=sflag, size = 0x4, scoped, tag = 'scoped memory for tpu_custom_call.1']
    #allocation4 [shape = 's32[1]{0}', space=sflag, size = 0x4, scoped, tag = 'scoped memory for tpu_custom_call.1']
    #allocation5 [shape = 'u8[8192]{0}', space=vmem, size = 0x2000, scoped, tag = 'output window, operand 0, single buffered']
    %6 = vsyncpa [#allocation3], 0
    %7 = vsyncpa [#allocation4], 0
    // Predicated region
    $region2: #{tpu_custom_call.1} parent=1 // pred_check
      _
    $region3: #{tpu_custom_call.1} parent=1 // pred_check_branch
      %9 = sbr.rel (0) target = $region5
    $region4: #{tpu_custom_call.1} parent=1 // pred_region
      %11 = vsyncadd [#allocation3], 0
      %s13 = sshll.u32 %s0, 4
      %s14 = int_to_ptr.hbm [resolvable:$true] %s13
      %s15 = sshll.u32 [#allocation2], 4
      %s16 = int_to_ptr.vmem [resolvable:$true] %s15
      %18 = dma.hbm_to_vmem [thread:$0]  %s14, 256, %s16, [#allocation3]
    $region5: #{tpu_custom_call.1} parent=1 // pred_fallthru
      _
    // Predicated region
    $region6: #{tpu_custom_call.1} parent=1 // pred_check
      _
    $region7: #{tpu_custom_call.1} parent=1 // pred_check_branch
      %20 = sbr.rel (0) target = $region9
    $region8: #{tpu_custom_call.1} parent=1 // pred_region
      %22 = dma.done [#allocation3], 256
    $region9: #{tpu_custom_call.1} parent=1 // pred_fallthru
      _
    %v23 = vld [vmem:[#allocation2] sm:$0xff]
    %v24 = vld [vmem:[#allocation2 + $0x8] sm:$0xff]
    %v25 = vadd.f32 %v23, -5.0
    %v26 = vadd.f32 %v24, -5.0
    %v27 = vmin.f32 %v25, 20.0
    %v28 = vmin.f32 %v26, 20.0
    %v29 = vmul.f32 %v27, 1.442695
    %v30 = vpow.pop %v29
    %v31 = vmul.f32 %v28, 1.442695
    %v32 = vpow.pop %v31
    %v33 = vadd.f32 %v30, 1.0
    %v34 = vlog2.pop %v33
    %v35 = vmul.f32 %v34, 0.6931472
    %v36 = vmul.f32 -0.5, %v30
    %v37 = vadd.f32 %v36, 1.0
    %v38 = vmul.f32 %v37, %v30
    %v39 = vand.u32 2147483647, %v30
    %vm40 = vcmp.lt.f32.partialorder %v39, 0.0004427343
    %v41 = vsel %vm40, %v38, %v35
    %v42 = vadd.f32 %v32, 1.0
    %v43 = vlog2.pop %v42
    %v44 = vmul.f32 %v43, 0.6931472
    %v45 = vmul.f32 -0.5, %v32
    %v46 = vadd.f32 %v45, 1.0
    %v47 = vmul.f32 %v46, %v32
    %v48 = vand.u32 2147483647, %v32
    %vm49 = vcmp.lt.f32.partialorder %v48, 0.0004427343
    %v50 = vsel %vm49, %v47, %v44
    %vm51 = vcmp.gt.f32.partialorder %v25, 20.0
    %vm52 = vcmp.gt.f32.partialorder %v26, 20.0
    %v53 = vsel %vm51, %v25, %v41
    %v54 = vsel %vm52, %v26, %v50
    %55 = vst [vmem:[#allocation5] sm:$0xff] %v53
    %56 = vst [vmem:[#allocation5 + $0x8] sm:$0xff] %v54
    // Predicated region
    $region10: #{tpu_custom_call.1} parent=1 // pred_check
      _
    $region11: #{tpu_custom_call.1} parent=1 // pred_check_branch
      %58 = sbr.rel (0) target = $region13
    $region12: #{tpu_custom_call.1} parent=1 // pred_region
      %60 = vsyncadd [#allocation4], 0
      %s62 = sshll.u32 [#allocation5], 4
      %s63 = int_to_ptr.vmem [resolvable:$true] %s62
      %s64 = sshll.u32 %s1, 4
      %s65 = int_to_ptr.hbm [resolvable:$true] %s64
      %67 = dma.vmem_to_hbm [thread:$0]  %s63, 256, %s65, [#allocation4]
    $region13: #{tpu_custom_call.1} parent=1 // pred_fallthru
      _
    // Predicated region
    $region14: #{tpu_custom_call.1} parent=1 // pred_check
      _
    $region15: #{tpu_custom_call.1} parent=1 // pred_check_branch
      %69 = sbr.rel (0) target = $region17
    $region16: #{tpu_custom_call.1} parent=1 // pred_region
      %71 = dma.done [#allocation4], 256
    $region17: #{tpu_custom_call.1} parent=1 // pred_fallthru
      _
    %72 = vsyncpa [#allocation3], 1
    %73 = vsyncpa [#allocation4], 1

</llo_original>
